<compile_context>
chip_gen: v5e
topology: v5e:2x2
jax: 0.10.0
libtpu: 0.0.40
codegen_flags: <defaults>
</compile_context>

<pallas_src>
import functools

import jax
import jax.numpy as jnp
from jax import lax
from jax.experimental import pallas as pl
from jax.experimental.pallas import tpu as pltpu


def _round_up(a, b):
    return (a + b - 1) // b * b


def _conv_gn_mish_kernel(x_ref, w_ref, b_ref, c2g_ref, g2c_ref, o_ref, xx_ref,
                         *, eps, t_valid, k_taps, ep_dtype, approx_recip):
    # x_ref   : (1, C_in, W)            compute dtype, conv-padded + lane-padded
    # w_ref   : (C_out_blk, K*C_in)     compute dtype, im2col-flattened
    # b_ref   : (C_out_blk, 1)          f32
    # c2g_ref : (C_out_blk, G_blk)      f32 one-hot channel -> group
    # g2c_ref : (G_blk, C_out_blk)      f32 one-hot group  -> channel
    # o_ref   : (1, C_out_blk, T_lanes) output dtype, lane-dense last dim
    # xx_ref  : (K*C_in, T_lanes)       VMEM scratch: cached im2col slab
    C_in = x_ref.shape[1]
    C_out_blk = w_ref.shape[0]
    T_lanes = o_ref.shape[2]
    G_blk = c2g_ref.shape[1]
    cg = C_out_blk // G_blk

    # Build the im2col slab once per batch row: the x block stays VMEM-resident
    # across the inner group-block axis, so only rebuild when g == 0.
    @pl.when(pl.program_id(1) == 0)
    def _build_im2col():
        x = x_ref[0]                                        # (C_in, W)
        for k in range(k_taps):
            xx_ref[k * C_in:(k + 1) * C_in, :] = x[:, k:k + T_lanes]

    # --- Conv1d as one MXU matmul (f32 accumulation), bias added afterwards ---
    acc = jnp.dot(w_ref[...], xx_ref[...], preferred_element_type=jnp.float32)
    acc = acc + b_ref[...].astype(jnp.float32)              # (C_out_blk, T_lanes)

    # --- GroupNorm (affine=False, biased variance), masked over valid lanes ---
    if t_valid == T_lanes:
        acc_m = acc
    else:
        lane = lax.broadcasted_iota(jnp.int32, (1, T_lanes), 1)
        acc_m = jnp.where(lane < t_valid, acc, 0.0)
    cnt = jnp.float32(cg * t_valid)
    ch_sum = jnp.sum(acc_m, axis=1, keepdims=True)           # (C_out_blk, 1)
    ch_sq = jnp.sum(acc_m * acc_m, axis=1, keepdims=True)    # (C_out_blk, 1)
    stats = jnp.concatenate([ch_sum, ch_sq], axis=1)         # (C_out_blk, 2)
    g_stats = jnp.dot(g2c_ref[...], stats,
                      preferred_element_type=jnp.float32) / cnt   # (G_blk, 2)
    g_mean = g_stats[:, 0:1]
    # TODO(synk): E[x^2]-mean^2 loses precision for huge cg*T; clamp avoids NaN.
    g_var = jnp.maximum(g_stats[:, 1:2] - g_mean * g_mean, 0.0)
    g_inv = lax.rsqrt(g_var + eps)
    g_pack = jnp.concatenate([g_mean, g_inv], axis=1)        # (G_blk, 2)
    ch = jnp.dot(c2g_ref[...], g_pack,
                 preferred_element_type=jnp.float32)         # (C_out_blk, 2)

    # Normalize in f32, then run the elementwise epilogue in ep_dtype
    # (bf16 on v6e/v7x packs 2x per vreg; keep f32 on v5e).
    y = ((acc - ch[:, 0:1]) * ch[:, 1:2]).astype(ep_dtype)

    # --- Mish: y*tanh(softplus(y)) == y*(z^2+2z)/(z^2+2z+2), z = exp(y) ---
    z = jnp.exp(jnp.minimum(y, 20.0))
    num = z * (z + 2.0)
    den = num + 2.0
    if approx_recip:
        ratio = num * pl.reciprocal(den.astype(jnp.float32),
                                    approx=True).astype(y.dtype)
    else:
        ratio = num / den
    o_ref[0] = (y * jnp.where(y > 20.0, 1.0, ratio)).astype(o_ref.dtype)


def _vmem_estimate(C_in, K, C_out_blk, T_lanes, W, cdt_bytes, out_bytes):
    """Rough per-core VMEM footprint: double-buffered blocks + scratch + temps."""
    x_blk = C_in * W * cdt_bytes
    w_blk = C_out_blk * K * C_in * cdt_bytes
    o_blk = C_out_blk * T_lanes * out_bytes
    small = C_out_blk * 4 * 4                       # bias + one-hot maps
    xx = K * C_in * T_lanes * cdt_bytes             # im2col scratch
    temps = 4 * C_out_blk * T_lanes * 4             # live f32 epilogue temporaries
    return 2 * (x_blk + w_blk + o_blk + small) + xx + temps


def conv1d_block(x, weight, bias, *, n_groups=8, eps=1e-5,
                 groups_per_block=None, compute_dtype=jnp.bfloat16,
                 epilogue_dtype=None, out_dtype=jnp.float32,
                 use_approx_reciprocal=True,
                 vmem_budget_bytes=40 * 1024 * 1024):
    """Conv1d(pad=K//2) -> GroupNorm(n_groups, affine=False) -> Mish.

    x: (B, C_in, T); weight: (C_out, C_in, K); bias: (C_out,).
    """
    B, C_in, T = x.shape
    C_out, C_in_w, K = weight.shape
    assert C_in_w == C_in
    # padding=K//2 only preserves length T for odd K (PyTorch returns T+1 for even K).
    assert K % 2 == 1, "only odd kernel_size matches PyTorch output length here"
    assert C_out % n_groups == 0, "C_out must be divisible by n_groups"
    cg = C_out // n_groups

    if epilogue_dtype is None:
        epilogue_dtype = compute_dtype   # pass jnp.float32 explicitly on v5e
    cdt_bytes = jnp.dtype(compute_dtype).itemsize
    out_bytes = jnp.dtype(out_dtype).itemsize
    # bf16-blocked operands want 16-row sublane packing on the second-minor dim.
    sub_align = 16 if min(cdt_bytes, out_bytes) < 4 else 8

    pad = K // 2
    T_lanes = _round_up(T, 128)                 # lane-dense output stores
    W = _round_up(T_lanes + K - 1, 128)         # conv-padded + lane-padded input

    # Largest group block whose footprint fits the VMEM budget (sized for v7x's
    # 64 MiB per core by default; raise vmem_budget_bytes on v6e/v5e).
    if groups_per_block is None:
        cands = [d for d in range(n_groups, 0, -1)
                 if n_groups % d == 0
                 and (d * cg == C_out or (d * cg) % sub_align == 0)]
        groups_per_block = cands[-1]
        for d in cands:
            if _vmem_estimate(C_in, K, d * cg, T_lanes, W,
                              cdt_bytes, out_bytes) <= vmem_budget_bytes:
                groups_per_block = d
                break
    assert n_groups % groups_per_block == 0
    C_out_blk = groups_per_block * cg
    n_gblocks = n_groups // groups_per_block
    assert C_out_blk == C_out or C_out_blk % sub_align == 0, (
        f"groups_per_block * (C_out // n_groups) must be a multiple of {sub_align} "
        "(or cover all of C_out)")

    est = _vmem_estimate(C_in, K, C_out_blk, T_lanes, W, cdt_bytes, out_bytes)
    vmem_limit = int(min(max(2 * est, 32 * 1024 * 1024), 64 * 1024 * 1024))

    x_pad = jnp.pad(x.astype(compute_dtype),
                    ((0, 0), (0, 0), (pad, W - T - pad)))
    # im2col-flattened weight: w_flat[o, k*C_in + c] = weight[o, c, k]
    w_flat = jnp.transpose(weight, (0, 2, 1)).reshape(C_out, K * C_in)
    w_flat = w_flat.astype(compute_dtype)
    b2 = bias.reshape(C_out, 1).astype(jnp.float32)

    # Block-local one-hot channel<->group maps (built once in the wrapper).
    ch_ids = jnp.arange(C_out_blk) // cg
    gr_ids = jnp.arange(groups_per_block)
    c2g = (ch_ids[:, None] == gr_ids[None, :]).astype(jnp.float32)
    g2c = c2g.T

    kernel = functools.partial(
        _conv_gn_mish_kernel, eps=eps, t_valid=T, k_taps=K,
        ep_dtype=jnp.dtype(epilogue_dtype), approx_recip=use_approx_reciprocal)

    # Grid: batch outer ("parallel", megacore-shardable), group blocks inner
    # ("arbitrary" so the cached im2col scratch stays valid within a batch row).
    out = pl.pallas_call(
        kernel,
        out_shape=jax.ShapeDtypeStruct((B, C_out, T_lanes), out_dtype),
        grid_spec=pltpu.PrefetchScalarGridSpec(
            num_scalar_prefetch=0,
            grid=(B, n_gblocks),
            in_specs=[
                pl.BlockSpec((1, C_in, W), lambda b, g: (b, 0, 0)),
                pl.BlockSpec((C_out_blk, K * C_in), lambda b, g: (g, 0)),
                pl.BlockSpec((C_out_blk, 1), lambda b, g: (g, 0)),
                pl.BlockSpec((C_out_blk, groups_per_block), lambda b, g: (0, 0)),
                pl.BlockSpec((groups_per_block, C_out_blk), lambda b, g: (0, 0)),
            ],
            out_specs=pl.BlockSpec((1, C_out_blk, T_lanes), lambda b, g: (b, g, 0)),
            scratch_shapes=[pltpu.VMEM((K * C_in, T_lanes), compute_dtype)],
        ),
        compiler_params=pltpu.CompilerParams(
            dimension_semantics=("parallel", "arbitrary"),
            vmem_limit_bytes=vmem_limit,
        ),
    )(x_pad, w_flat, b2, c2g, g2c)

    return out if T_lanes == T else out[:, :, :T]


def _reference(x, weight, bias, n_groups=8, eps=1e-5):
    """Plain-JAX reference replicating PyTorch Conv1d+GroupNorm+Mish semantics."""
    K = weight.shape[-1]
    y = lax.conv_general_dilated(
        x, weight, window_strides=(1,), padding=[(K // 2, K // 2)],
        dimension_numbers=("NCH", "OIH", "NCH"),
    ) + bias[None, :, None]
    B, C, T = y.shape
    yg = y.reshape(B, n_groups, (C // n_groups) * T)
    mean = yg.mean(axis=-1, keepdims=True)
    var = yg.var(axis=-1, keepdims=True)
    yn = ((yg - mean) / jnp.sqrt(var + eps)).reshape(B, C, T)
    return yn * jnp.tanh(jax.nn.softplus(yn))


if __name__ == "__main__":
    B, C_in, C_out, T, K, n_groups = 2, 8, 16, 16, 3, 8

    key = jax.random.PRNGKey(0)
    kx, kw, kb = jax.random.split(key, 3)
    fan_in = C_in * K
    bound = 1.0 / (fan_in ** 0.5)
    x = jax.random.normal(kx, (B, C_in, T), dtype=jnp.float32)
    weight = jax.random.uniform(kw, (C_out, C_in, K), jnp.float32, -bound, bound)
    bias = jax.random.uniform(kb, (C_out,), jnp.float32, -bound, bound)

    ref = _reference(x, weight, bias, n_groups=n_groups)

    # 1) Strict f32 path: exact divide, 2 channel-group blocks — exercises the
    #    cached-im2col scratch reuse across the inner grid axis + masked stats.
    out_f32 = conv1d_block(x, weight, bias, n_groups=n_groups,
                           groups_per_block=4, compute_dtype=jnp.float32,
                           use_approx_reciprocal=False)
    out_f32 = jax.block_until_ready(out_f32)
    assert out_f32.shape == (B, C_out, T)
    assert jnp.allclose(out_f32, ref, atol=1e-4, rtol=1e-4), (
        float(jnp.max(jnp.abs(out_f32 - ref))))

    # 2) Default fast path: bf16 MXU + bf16 epilogue + approx reciprocal,
    #    auto group blocking, lane-padded T.
    out_fast = conv1d_block(x, weight, bias, n_groups=n_groups)
    out_fast = jax.block_until_ready(out_fast)
    assert out_fast.shape == (B, C_out, T)
    assert jnp.allclose(out_fast, ref, atol=1e-1, rtol=1e-1), (
        float(jnp.max(jnp.abs(out_fast - ref))))

    print("KERNEL_OK")
</pallas_src>

<mosaic_0001>
module attributes {stable_mosaic.version = 11 : i64} {
  func.func @_conv_gn_mish_kernel(%arg0: i32, %arg1: i32, %arg2: memref<1x8x256xf32, #tpu.memory_space<vmem>>, %arg3: memref<8x24xf32, #tpu.memory_space<vmem>>, %arg4: memref<8x1xf32, #tpu.memory_space<vmem>>, %arg5: memref<8x4xf32, #tpu.memory_space<vmem>>, %arg6: memref<4x8xf32, #tpu.memory_space<vmem>>, %arg7: memref<1x8x128xf32, #tpu.memory_space<vmem>>, %arg8: memref<24x128xf32, #tpu.memory_space<vmem>>) attributes {dimension_semantics = [#tpu.dimension_semantics<parallel>, #tpu.dimension_semantics<arbitrary>], iteration_bounds = array<i64: 2, 2>, scalar_prefetch = 0 : i64, scratch_operands = 1 : i64, tpu.core_type = #tpu.core_type<tc>, window_params = [{transform_indices = @transform_0, window_bounds = array<i64: 1, 8, 256>}, {transform_indices = @transform_1, window_bounds = array<i64: 8, 24>}, {transform_indices = @transform_2, window_bounds = array<i64: 8, 1>}, {pipeline_mode = #tpu.pipeline_mode<synchronous>, transform_indices = @transform_3, window_bounds = array<i64: 8, 4>}, {pipeline_mode = #tpu.pipeline_mode<synchronous>, transform_indices = @transform_4, window_bounds = array<i64: 4, 8>}, {transform_indices = @transform_5, window_bounds = array<i64: 1, 8, 128>}]} {
    %c0_i32 = arith.constant 0 : i32
    %0 = arith.cmpi eq, %arg1, %c0_i32 : i32
    %1 = arith.extui %0 : i1 to i32
    %c0_i32_0 = arith.constant 0 : i32
    %2 = arith.cmpi ne, %1, %c0_i32_0 : i32
    scf.if %2 {
      %c0_26 = arith.constant 0 : index
      %c0_27 = arith.constant 0 : index
      %c0_28 = arith.constant 0 : index
      %61 = vector.load %arg2[%c0_26, %c0_27, %c0_28] : memref<1x8x256xf32, #tpu.memory_space<vmem>>, vector<1x8x256xf32>
      %62 = vector.shape_cast %61 : vector<1x8x256xf32> to vector<8x256xf32>
      %63 = vector.extract_strided_slice %62 {offsets = [0, 0], sizes = [8, 128], strides = [1, 1]} : vector<8x256xf32> to vector<8x128xf32>
      %c0_29 = arith.constant 0 : index
      %c0_30 = arith.constant 0 : index
      %64 = vector.load %arg8[%c0_29, %c0_30] : memref<24x128xf32, #tpu.memory_space<vmem>>, vector<8x128xf32>
      tpu.vector_store %arg8[%c0_29, %c0_30], %63 {strides = array<i32>} : memref<24x128xf32, #tpu.memory_space<vmem>>, vector<8x128xf32>,
      %65 = vector.extract_strided_slice %62 {offsets = [0, 1], sizes = [8, 128], strides = [1, 1]} : vector<8x256xf32> to vector<8x128xf32>
      %c8 = arith.constant 8 : index
      %c0_31 = arith.constant 0 : index
      %66 = vector.load %arg8[%c8, %c0_31] : memref<24x128xf32, #tpu.memory_space<vmem>>, vector<8x128xf32>
      tpu.vector_store %arg8[%c8, %c0_31], %65 {strides = array<i32>} : memref<24x128xf32, #tpu.memory_space<vmem>>, vector<8x128xf32>,
      %67 = vector.extract_strided_slice %62 {offsets = [0, 2], sizes = [8, 128], strides = [1, 1]} : vector<8x256xf32> to vector<8x128xf32>
      %c16 = arith.constant 16 : index
      %c0_32 = arith.constant 0 : index
      %68 = vector.load %arg8[%c16, %c0_32] : memref<24x128xf32, #tpu.memory_space<vmem>>, vector<8x128xf32>
      tpu.vector_store %arg8[%c16, %c0_32], %67 {strides = array<i32>} : memref<24x128xf32, #tpu.memory_space<vmem>>, vector<8x128xf32>,
    } else {
    }
    %c0 = arith.constant 0 : index
    %c0_1 = arith.constant 0 : index
    %3 = vector.load %arg3[%c0, %c0_1] : memref<8x24xf32, #tpu.memory_space<vmem>>, vector<8x24xf32>
    %c0_2 = arith.constant 0 : index
    %c0_3 = arith.constant 0 : index
    %4 = vector.load %arg8[%c0_2, %c0_3] : memref<24x128xf32, #tpu.memory_space<vmem>>, vector<24x128xf32>
    %cst = arith.constant dense<0.000000e+00> : vector<8x128xf32>
    %5 = tpu.matmul %3, %4, %cst {dimension_numbers = #tpu.dot_dimension_numbers<[1], [0], [0], [1], [0, 0, 1, 1], [], []>} : vector<8x24xf32>, vector<24x128xf32>, vector<8x128xf32> -> vector<8x128xf32>
    %c0_4 = arith.constant 0 : index
    %c0_5 = arith.constant 0 : index
    %6 = vector.load %arg4[%c0_4, %c0_5] : memref<8x1xf32, #tpu.memory_space<vmem>>, vector<8x1xf32>
    %7 = vector.broadcast %6 : vector<8x1xf32> to vector<8x128xf32>
    %8 = arith.addf %5, %7 : vector<8x128xf32>
    %9 = tpu.iota {dimensions = array<i32: 1>} : vector<1x128xi32>
    %c16_i32 = arith.constant 16 : i32
    %10 = vector.broadcast %c16_i32 : i32 to vector<1x128xi32>
    %11 = arith.cmpi slt, %9, %10 : vector<1x128xi32>
    %cst_6 = arith.constant 0.000000e+00 : f32
    %12 = vector.shape_cast %11 : vector<1x128xi1> to vector<1x128xi1>
    %13 = vector.broadcast %12 : vector<1x128xi1> to vector<8x128xi1>
    %14 = vector.broadcast %cst_6 : f32 to vector<8x128xf32>
    %15 = arith.select %13, %8, %14 : vector<8x128xi1>, vector<8x128xf32>
    %cst_7 = arith.constant dense<0.000000e+00> : vector<8xf32>
    %16 = vector.multi_reduction <add>, %15, %cst_7 [1] : vector<8x128xf32> to vector<8xf32>
    %17 = vector.shape_cast %16 : vector<8xf32> to vector<8x1xf32>
    %18 = arith.mulf %15, %15 : vector<8x128xf32>
    %cst_8 = arith.constant dense<0.000000e+00> : vector<8xf32>
    %19 = vector.multi_reduction <add>, %18, %cst_8 [1] : vector<8x128xf32> to vector<8xf32>
    %20 = vector.shape_cast %19 : vector<8xf32> to vector<8x1xf32>
    %21 = tpu.concatenate %17, %20 in 1 : vector<8x1xf32>, vector<8x1xf32> -> vector<8x2xf32>
    %c0_9 = arith.constant 0 : index
    %c0_10 = arith.constant 0 : index
    %22 = vector.load %arg6[%c0_9, %c0_10] : memref<4x8xf32, #tpu.memory_space<vmem>>, vector<4x8xf32>
    %cst_11 = arith.constant dense<0.000000e+00> : vector<4x2xf32>
    %23 = tpu.matmul %22, %21, %cst_11 {dimension_numbers = #tpu.dot_dimension_numbers<[1], [0], [0], [1], [0, 0, 1, 1], [], []>} : vector<4x8xf32>, vector<8x2xf32>, vector<4x2xf32> -> vector<4x2xf32>
    %cst_12 = arith.constant 3.200000e+01 : f32
    %24 = vector.broadcast %cst_12 : f32 to vector<4x2xf32>
    %25 = arith.divf %23, %24 : vector<4x2xf32>
    %26 = vector.extract_strided_slice %25 {offsets = [0, 0], sizes = [4, 1], strides = [1, 1]} : vector<4x2xf32> to vector<4x1xf32>
    %27 = vector.extract_strided_slice %25 {offsets = [0, 1], sizes = [4, 1], strides = [1, 1]} : vector<4x2xf32> to vector<4x1xf32>
    %28 = arith.mulf %26, %26 : vector<4x1xf32>
    %29 = arith.subf %27, %28 : vector<4x1xf32>
    %cst_13 = arith.constant 0.000000e+00 : f32
    %30 = vector.broadcast %cst_13 : f32 to vector<4x1xf32>
    %31 = arith.maximumf %29, %30 : vector<4x1xf32>
    %cst_14 = arith.constant 9.99999974E-6 : f32
    %32 = vector.broadcast %cst_14 : f32 to vector<4x1xf32>
    %33 = arith.addf %31, %32 : vector<4x1xf32>
    %34 = math.rsqrt %33 : vector<4x1xf32>
    %35 = tpu.concatenate %26, %34 in 1 : vector<4x1xf32>, vector<4x1xf32> -> vector<4x2xf32>
    %c0_15 = arith.constant 0 : index
    %c0_16 = arith.constant 0 : index
    %36 = vector.load %arg5[%c0_15, %c0_16] : memref<8x4xf32, #tpu.memory_space<vmem>>, vector<8x4xf32>
    %cst_17 = arith.constant dense<0.000000e+00> : vector<8x2xf32>
    %37 = tpu.matmul %36, %35, %cst_17 {dimension_numbers = #tpu.dot_dimension_numbers<[1], [0], [0], [1], [0, 0, 1, 1], [], []>} : vector<8x4xf32>, vector<4x2xf32>, vector<8x2xf32> -> vector<8x2xf32>
    %38 = vector.extract_strided_slice %37 {offsets = [0, 0], sizes = [8, 1], strides = [1, 1]} : vector<8x2xf32> to vector<8x1xf32>
    %39 = vector.broadcast %38 : vector<8x1xf32> to vector<8x128xf32>
    %40 = arith.subf %8, %39 : vector<8x128xf32>
    %41 = vector.extract_strided_slice %37 {offsets = [0, 1], sizes = [8, 1], strides = [1, 1]} : vector<8x2xf32> to vector<8x1xf32>
    %42 = vector.broadcast %41 : vector<8x1xf32> to vector<8x128xf32>
    %43 = arith.mulf %40, %42 : vector<8x128xf32>
    %cst_18 = arith.constant 2.000000e+01 : f32
    %44 = vector.broadcast %cst_18 : f32 to vector<8x128xf32>
    %45 = arith.minimumf %43, %44 : vector<8x128xf32>
    %46 = math.exp %45 : vector<8x128xf32>
    %cst_19 = arith.constant 2.000000e+00 : f32
    %47 = vector.broadcast %cst_19 : f32 to vector<8x128xf32>
    %48 = arith.addf %46, %47 : vector<8x128xf32>
    %49 = arith.mulf %46, %48 : vector<8x128xf32>
    %cst_20 = arith.constant 2.000000e+00 : f32
    %50 = vector.broadcast %cst_20 : f32 to vector<8x128xf32>
    %51 = arith.addf %49, %50 : vector<8x128xf32>
    %52 = arith.divf %49, %51 : vector<8x128xf32>
    %cst_21 = arith.constant 2.000000e+01 : f32
    %53 = vector.broadcast %cst_21 : f32 to vector<8x128xf32>
    %54 = arith.cmpf ogt, %43, %53 : vector<8x128xf32>
    %cst_22 = arith.constant 1.000000e+00 : f32
    %55 = vector.broadcast %cst_22 : f32 to vector<8x128xf32>
    %56 = arith.select %54, %55, %52 : vector<8x128xi1>, vector<8x128xf32>
    %57 = arith.mulf %43, %56 : vector<8x128xf32>
    %c0_23 = arith.constant 0 : index
    %c0_24 = arith.constant 0 : index
    %c0_25 = arith.constant 0 : index
    %58 = vector.load %arg7[%c0_23, %c0_24, %c0_25] : memref<1x8x128xf32, #tpu.memory_space<vmem>>, vector<1x8x128xf32>
    %59 = vector.shape_cast %58 : vector<1x8x128xf32> to vector<8x128xf32>
    %60 = vector.shape_cast %57 : vector<8x128xf32> to vector<1x8x128xf32>
    tpu.vector_store %arg7[%c0_23, %c0_24, %c0_25], %60 {strides = array<i32>} : memref<1x8x128xf32, #tpu.memory_space<vmem>>, vector<1x8x128xf32>,
    return
  }
  func.func @transform_0(%arg0: i32, %arg1: i32) -> (i32, i32, i32) {
    %c0_i32 = arith.constant 0 : i32
    %c0_i32_0 = arith.constant 0 : i32
    %c0_i32_1 = arith.constant 0 : i32
    return %arg0, %c0_i32, %c0_i32_0 : i32, i32, i32
  }
  func.func @transform_1(%arg0: i32, %arg1: i32) -> (i32, i32) {
    %c0_i32 = arith.constant 0 : i32
    %c0_i32_0 = arith.constant 0 : i32
    return %arg1, %c0_i32 : i32, i32
  }
  func.func @transform_2(%arg0: i32, %arg1: i32) -> (i32, i32) {
    %c0_i32 = arith.constant 0 : i32
    %c0_i32_0 = arith.constant 0 : i32
    return %arg1, %c0_i32 : i32, i32
  }
  func.func @transform_3(%arg0: i32, %arg1: i32) -> (i32, i32) {
    %c0_i32 = arith.constant 0 : i32
    %c0_i32_0 = arith.constant 0 : i32
    %c0_i32_1 = arith.constant 0 : i32
    return %c0_i32, %c0_i32_0 : i32, i32
  }
  func.func @transform_4(%arg0: i32, %arg1: i32) -> (i32, i32) {
    %c0_i32 = arith.constant 0 : i32
    %c0_i32_0 = arith.constant 0 : i32
    %c0_i32_1 = arith.constant 0 : i32
    return %c0_i32, %c0_i32_0 : i32, i32
  }
  func.func @transform_5(%arg0: i32, %arg1: i32) -> (i32, i32, i32) {
    %c0_i32 = arith.constant 0 : i32
    %c0_i32_0 = arith.constant 0 : i32
    return %arg0, %arg1, %c0_i32 : i32, i32, i32
  }
}

</mosaic_0001>

<llo_original>
// kernel: tpu_custom_call.1
$region0: #{tpu_custom_call.1}
  #allocation0 [shape = 'u32[]', space=smem, size = 0x4, offset = 0x4, fixed_abs, tag = 'smem constant byte address 0x4 - core index']
  #allocation1 [shape = 'u32[72,128]{1,0:T(1,128)}', space=vmem, size = 0x9000, scoped, tag = 'internal scratch']
  #allocation2 [shape = 'f32[24,128]{1,0:T(8,128)}', space=vmem, size = 0x3000, scoped, tag = 'scratch operand']
  %s0 = inlined_call_operand.hbm [shape: f32[2,8,256], index: 0, kind: input, shape index: {}]
  %s1 = inlined_call_operand.vmem [shape: f32[16,24], index: 1, kind: input, shape index: {}]
  %s2 = inlined_call_operand.vmem [shape: f32[16,1], index: 2, kind: input, shape index: {}]
  %s3 = inlined_call_operand.vmem [shape: f32[8,4], index: 3, kind: input, shape index: {}]
  %s4 = inlined_call_operand.vmem [shape: f32[4,8], index: 4, kind: input, shape index: {}]
  %s5 = inlined_call_operand.hbm [shape: f32[2,16,128], index: 5, kind: output, shape index: {}]
  %s6 = sld [smem:[#allocation0]]
  $region61: #{tpu_custom_call.1} parent=0
    _
  %s8 = ssub.s32 1, %s6
  %s9 = scalar_select 0, %s8, %s6
  $region1: #{tpu_custom_call.1} parent=0
    #allocation3 [shape = 'u8[16384]{0}', space=vmem, size = 0x4000, scoped, tag = 'input window, operand 0']
    #allocation4 [shape = 's32[2]{0}', space=sflag, size = 0x8, scoped, tag = 'scoped memory for tpu_custom_call.1']
    #allocation5 [shape = 's32[2]{0}', space=sflag, size = 0x8, scoped, tag = 'scoped memory for tpu_custom_call.1']
    #allocation6 [shape = 'u8[8192]{0}', space=vmem, size = 0x2000, scoped, tag = 'output window, operand 0']
    %10 = vsyncpa [#allocation4], 0
    %s11 = scalar_lea.sflag [#allocation4], 1
    %12 = vsyncpa %s11, 0
    %13 = vsyncpa [#allocation5], 0
    %s14 = scalar_lea.sflag [#allocation5], 1
    %15 = vsyncpa %s14, 0
    loop: start=0, step=1, limit=6
    $region2: #{tpu_custom_call.1} parent=1 // loop_pre_header
      _
    $region3: #{tpu_custom_call.1} parent=1 // loop_header
      %s17 = sphi 0, %s21
      %p18 = scmp.ge.s32.totalorder %s17, 6
      %s24 = sphi 0, %s36
      %s25 = sphi 0, %s32
      %s26 = sphi 0, %s24
      %s27 = sphi 0, %s25
      %s28 = sphi 0, %s26
      %s29 = sphi 0, %s27
      %s39 = sphi 0, %s41
      %s42 = sphi 0, %s39
      %s43 = sphi 0, %s42
      %s59 = sphi 0, %s43
      %s65 = sphi 0, %s67
      %s68 = sphi 0, %s65
      %s69 = sphi 0, %s68
      %s85 = sphi 0, %s69
      %s91 = sphi 0, %s93
      %s94 = sphi 0, %s91
      %s95 = sphi 0, %s94
      %s111 = sphi 0, %s95
      %s115 = sphi 0, %s115
      %s117 = sphi 0, %s115
      %s118 = sphi 0, %s117
      %s132 = sphi 0, %s118
      %s136 = sphi 0, %s136
      %s138 = sphi 0, %s136
      %s139 = sphi 0, %s138
      %s153 = sphi 0, %s139
      %s161 = sphi 0, %s163
      %s164 = sphi 0, %s161
      %s165 = sphi 0, %s164
      %s181 = sphi 0, %s165
    $region4: #{tpu_custom_call.1} parent=1 // loop_header_branch
      %20 = sbr.rel (%p18) target = $region8
    $region5: #{tpu_custom_call.1} parent=1 // loop_body
      %s22 = ssub.s32 %s17, 1
      %s23 = ssub.s32 %s17, 2
      %s30 = sadd.s32 1, %s25
      %p31 = scmp.ge.s32.totalorder %s30, 2
      %s32 = scalar_select %p31, 0, %s30
      %s33 = sadd.s32 1, %s24
      %s34 = scalar_select %p31, %s33, %s24
      %p35 = scmp.ge.s32.totalorder %s34, 2
      %s36 = scalar_select %p35, 0, %s34
      %s37 = ssub.s32 %s24, %s36
      %p38 = scmp.eq.s32.totalorder %s37, 0
      %s40 = sadd.s32 %s39, 1
      %s41 = scalar_select %p38, %s39, %s40
      %p44 = pneg %p38
      %p45 = scmp.eq.s32.totalorder %s17, 3
      %p46 = por %p44, %p45
      %p47 = scmp.ne.s32.totalorder %s39, %s42
      %p48 = scmp.eq.s32.totalorder %s17, 0
      %p49 = por %p47, %p48
      %p50 = scmp.ne.s32.totalorder %s39, %s42
      %p51 = scmp.eq.s32.totalorder %s22, 3
      %p52 = por %p50, %p51
      %p53 = scmp.ne.s32.totalorder %s42, %s43
      %p54 = scmp.eq.s32.totalorder %s22, 0
      %p55 = por %p53, %p54
      %p56 = scmp.ne.s32.totalorder %s42, %s43
      %p57 = scmp.eq.s32.totalorder %s23, 3
      %p58 = por %p56, %p57
      %p60 = scmp.ne.s32.totalorder %s43, %s59
      %p61 = scmp.eq.s32.totalorder %s23, 0
      %p62 = por %p60, %p61
      %s63 = ssub.s32 %s25, %s32
      %p64 = scmp.eq.s32.totalorder %s63, 0
      %s66 = sadd.s32 %s65, 1
      %s67 = scalar_select %p64, %s65, %s66
      %p70 = pneg %p64
      %p71 = scmp.eq.s32.totalorder %s17, 3
      %p72 = por %p70, %p71
      %p73 = scmp.ne.s32.totalorder %s65, %s68
      %p74 = scmp.eq.s32.totalorder %s17, 0
      %p75 = por %p73, %p74
      %p76 = scmp.ne.s32.totalorder %s65, %s68
      %p77 = scmp.eq.s32.totalorder %s22, 3
      %p78 = por %p76, %p77
      %p79 = scmp.ne.s32.totalorder %s68, %s69
      %p80 = scmp.eq.s32.totalorder %s22, 0
      %p81 = por %p79, %p80
      %p82 = scmp.ne.s32.totalorder %s68, %s69
      %p83 = scmp.eq.s32.totalorder %s23, 3
      %p84 = por %p82, %p83
      %p86 = scmp.ne.s32.totalorder %s69, %s85
      %p87 = scmp.eq.s32.totalorder %s23, 0
      %p88 = por %p86, %p87
      %s89 = ssub.s32 %s25, %s32
      %p90 = scmp.eq.s32.totalorder %s89, 0
      %s92 = sadd.s32 %s91, 1
      %s93 = scalar_select %p90, %s91, %s92
      %p96 = pneg %p90
      %p97 = scmp.eq.s32.totalorder %s17, 3
      %p98 = por %p96, %p97
      %p99 = scmp.ne.s32.totalorder %s91, %s94
      %p100 = scmp.eq.s32.totalorder %s17, 0
      %p101 = por %p99, %p100
      %p102 = scmp.ne.s32.totalorder %s91, %s94
      %p103 = scmp.eq.s32.totalorder %s22, 3
      %p104 = por %p102, %p103
      %p105 = scmp.ne.s32.totalorder %s94, %s95
      %p106 = scmp.eq.s32.totalorder %s22, 0
      %p107 = por %p105, %p106
      %p108 = scmp.ne.s32.totalorder %s94, %s95
      %p109 = scmp.eq.s32.totalorder %s23, 3
      %p110 = por %p108, %p109
      %p112 = scmp.ne.s32.totalorder %s95, %s111
      %p113 = scmp.eq.s32.totalorder %s23, 0
      %p114 = por %p112, %p113
      %s116 = sadd.s32 %s115, 1
      %p119 = scmp.eq.s32.totalorder %s17, 3
      %p120 = scmp.ne.s32.totalorder %s115, %s117
      %p121 = scmp.eq.s32.totalorder %s17, 0
      %p122 = por %p120, %p121
      %p123 = scmp.ne.s32.totalorder %s115, %s117
      %p124 = scmp.eq.s32.totalorder %s22, 3
      %p125 = por %p123, %p124
      %p126 = scmp.ne.s32.totalorder %s117, %s118
      %p127 = scmp.eq.s32.totalorder %s22, 0
      %p128 = por %p126, %p127
      %p129 = scmp.ne.s32.totalorder %s117, %s118
      %p130 = scmp.eq.s32.totalorder %s23, 3
      %p131 = por %p129, %p130
      %p133 = scmp.ne.s32.totalorder %s118, %s132
      %p134 = scmp.eq.s32.totalorder %s23, 0
      %p135 = por %p133, %p134
      %s137 = sadd.s32 %s136, 1
      %p140 = scmp.eq.s32.totalorder %s17, 3
      %p141 = scmp.ne.s32.totalorder %s136, %s138
      %p142 = scmp.eq.s32.totalorder %s17, 0
      %p143 = por %p141, %p142
      %p144 = scmp.ne.s32.totalorder %s136, %s138
      %p145 = scmp.eq.s32.totalorder %s22, 3
      %p146 = por %p144, %p145
      %p147 = scmp.ne.s32.totalorder %s138, %s139
      %p148 = scmp.eq.s32.totalorder %s22, 0
      %p149 = por %p147, %p148
      %p150 = scmp.ne.s32.totalorder %s138, %s139
      %p151 = scmp.eq.s32.totalorder %s23, 3
      %p152 = por %p150, %p151
      %p154 = scmp.ne.s32.totalorder %s139, %s153
      %p155 = scmp.eq.s32.totalorder %s23, 0
      %p156 = por %p154, %p155
      %s157 = ssub.s32 %s24, %s36
      %s158 = ssub.s32 %s25, %s32
      %s159 = sor.u32 %s157, %s158
      %p160 = scmp.eq.s32.totalorder %s159, 0
      %s162 = sadd.s32 %s161, 1
      %s163 = scalar_select %p160, %s161, %s162
      %p166 = pneg %p160
      %p167 = scmp.eq.s32.totalorder %s17, 3
      %p168 = por %p166, %p167
      %p169 = scmp.ne.s32.totalorder %s161, %s164
      %p170 = scmp.eq.s32.totalorder %s17, 0
      %p171 = por %p169, %p170
      %p172 = scmp.ne.s32.totalorder %s161, %s164
      %p173 = scmp.eq.s32.totalorder %s22, 3
      %p174 = por %p172, %p173
      %p175 = scmp.ne.s32.totalorder %s164, %s165
      %p176 = scmp.eq.s32.totalorder %s22, 0
      %p177 = por %p175, %p176
      %p178 = scmp.ne.s32.totalorder %s164, %s165
      %p179 = scmp.eq.s32.totalorder %s23, 3
      %p180 = por %p178, %p179
      %p182 = scmp.ne.s32.totalorder %s165, %s181
      %p183 = scmp.eq.s32.totalorder %s23, 0
      %p184 = por %p182, %p183
      %p185 = scmp.le.s32.totalorder 1, %s17
      %p186 = scmp.lt.s32.totalorder %s17, 5
      %p187 = pnand %p185, %p186
      %p188 = pneg %p187
      // Predicated region
      $region9: #{tpu_custom_call.1} parent=5 // pred_check
        _
      $region10: #{tpu_custom_call.1} parent=5 // pred_check_branch
        %190 = sbr.rel (%p187) target = $region12
      $region11: #{tpu_custom_call.1} parent=5 // pred_region
        %s191 = ssub.s32 %s17, 1
        // Predicated region
        $region13: #{tpu_custom_call.1} parent=11 // pred_check
          %p192 = pneg %p128
        $region14: #{tpu_custom_call.1} parent=11 // pred_check_branch
          %194 = sbr.rel (%p192) target = $region16
        $region15: #{tpu_custom_call.1} parent=11 // pred_region
          _
        $region16: #{tpu_custom_call.1} parent=11 // pred_fallthru
          _
        // Predicated region
        $region17: #{tpu_custom_call.1} parent=11 // pred_check
          %p195 = pneg %p149
        $region18: #{tpu_custom_call.1} parent=11 // pred_check_branch
          %197 = sbr.rel (%p195) target = $region20
        $region19: #{tpu_custom_call.1} parent=11 // pred_region
          _
        $region20: #{tpu_custom_call.1} parent=11 // pred_fallthru
          _
      $region12: #{tpu_custom_call.1} parent=5 // pred_fallthru
        _
      %p198 = scmp.lt.s32.totalorder %s17, 4
      // Predicated region
      $region21: #{tpu_custom_call.1} parent=5 // pred_check
        %p199 = pneg %p198
      $region22: #{tpu_custom_call.1} parent=5 // pred_check_branch
        %201 = sbr.rel (%p199) target = $region24
      $region23: #{tpu_custom_call.1} parent=5 // pred_region
        // Predicated region
        $region25: #{tpu_custom_call.1} parent=23 // pred_check
          %p202 = pneg %p49
        $region26: #{tpu_custom_call.1} parent=23 // pred_check_branch
          %204 = sbr.rel (%p202) target = $region28
        $region27: #{tpu_custom_call.1} parent=23 // pred_region
          %s205 = sand.u32 %s39, 1
          %s206 = scalar_lea.sflag [#allocation4], %s205
          %s207 = sand.u32 %s39, 1
          %s208 = smul.addr %s207, 16
          %s209 = scalar_lea.vmem [#allocation3], %s208
          %211 = vsyncadd %s206, 0
          %s212 = smul.addr %s24, 2
          %s213 = smul.addr %s212, 8
          %s214 = scalar_lea.hbm %s0, %s213
          %s216 = sshll.u32 %s214, 4
          %s217 = int_to_ptr.hbm [resolvable:$true] %s216
          %s218 = sshll.u32 %s209, 4
          %s219 = int_to_ptr.vmem [resolvable:$true] %s218
          %221 = dma.hbm_to_vmem [thread:$0]  %s217, 256, %s219, %s206
        $region28: #{tpu_custom_call.1} parent=23 // pred_fallthru
          _
        // Predicated region
        $region29: #{tpu_custom_call.1} parent=23 // pred_check
          %p222 = pneg %p75
        $region30: #{tpu_custom_call.1} parent=23 // pred_check_branch
          %224 = sbr.rel (%p222) target = $region32
        $region31: #{tpu_custom_call.1} parent=23 // pred_region
          %p225 = scmp.lt.s32.totalorder %s25, 1
          %s226 = scalar_select %p225, %s25, 1
          %s227 = smul.addr %s226, 8
          %s228 = scalar_lea.vmem %s1, %s227
        $region32: #{tpu_custom_call.1} parent=23 // pred_fallthru
          _
        // Predicated region
        $region33: #{tpu_custom_call.1} parent=23 // pred_check
          %p229 = pneg %p101
        $region34: #{tpu_custom_call.1} parent=23 // pred_check_branch
          %231 = sbr.rel (%p229) target = $region36
        $region35: #{tpu_custom_call.1} parent=23 // pred_region
          %p232 = scmp.lt.s32.totalorder %s25, 1
          %s233 = scalar_select %p232, %s25, 1
          %s234 = smul.addr %s233, 8
          %s235 = scalar_lea.vmem %s2, %s234
        $region36: #{tpu_custom_call.1} parent=23 // pred_fallthru
          _
      $region24: #{tpu_custom_call.1} parent=5 // pred_fallthru
        _
      %p236 = scmp.le.s32.totalorder 1, %s17
      %p237 = scmp.lt.s32.totalorder %s17, 5
      %p238 = pnand %p236, %p237
      %p239 = pneg %p238
      // Predicated region
      $region37: #{tpu_custom_call.1} parent=5 // pred_check
        _
      $region38: #{tpu_custom_call.1} parent=5 // pred_check_branch
        %241 = sbr.rel (%p238) target = $region40
      $region39: #{tpu_custom_call.1} parent=5 // pred_region
        %s242 = ssub.s32 %s17, 1
        %s243 = sand.u32 %s42, 1
        %s244 = scalar_lea.sflag [#allocation4], %s243
        %s245 = sand.u32 %s42, 1
        %s246 = smul.addr %s245, 16
        %s247 = scalar_lea.vmem [#allocation3], %s246
        // Predicated region
        $region41: #{tpu_custom_call.1} parent=39 // pred_check
          %p248 = pneg %p55
        $region42: #{tpu_custom_call.1} parent=39 // pred_check_branch
          %250 = sbr.rel (%p248) target = $region44
        $region43: #{tpu_custom_call.1} parent=39 // pred_region
          %252 = dma.done %s244, 256
        $region44: #{tpu_custom_call.1} parent=39 // pred_fallthru
          _
        %s253 = sand.u32 %s42, 1
        %s254 = scalar_lea.sflag [#allocation4], %s253
        %s255 = sand.u32 %s42, 1
        %s256 = smul.addr %s255, 16
        %s257 = scalar_lea.vmem [#allocation3], %s256
        %p258 = pneg %p55
        %p259 = pneg %p52
        %p260 = scmp.lt.s32.totalorder %s27, 1
        %s261 = scalar_select %p260, %s27, 1
        %s262 = smul.addr %s261, 8
        %s263 = scalar_lea.vmem %s1, %s262
        %p264 = pneg %p81
        %p265 = pneg %p78
        %p266 = scmp.lt.s32.totalorder %s27, 1
        %s267 = scalar_select %p266, %s27, 1
        %s268 = smul.addr %s267, 8
        %s269 = scalar_lea.vmem %s2, %s268
        %p270 = pneg %p107
        %p271 = pneg %p104
        %p272 = pneg %p128
        %p273 = pneg %p125
        %p274 = pneg %p149
        %p275 = pneg %p146
        %p276 = pneg %p177
        %p277 = pneg %p174
        %s278 = sand.u32 %s164, 1
        %s279 = scalar_lea.sflag [#allocation5], %s278
        %s280 = sand.u32 %s164, 1
        %s281 = smul.addr %s280, 8
        %s282 = scalar_lea.vmem [#allocation6], %s281
        %p283 = scmp.lt.s32.totalorder %s27, 1
        %s284 = scalar_select %p283, %s27, 1
        %s285 = smul.addr %s284, 8
        %s286 = scalar_lea.vmem %s1, %s285
        %p287 = scmp.lt.s32.totalorder %s27, 1
        %s288 = scalar_select %p287, %s27, 1
        %s289 = smul.addr %s288, 8
        %s290 = scalar_lea.vmem %s2, %s289
        %p291 = scmp.eq.s32.totalorder %s27, 0
        // Predicated region
        $region45: #{tpu_custom_call.1} parent=39 // pred_check
          %p292 = pneg %p291
        $region46: #{tpu_custom_call.1} parent=39 // pred_check_branch
          %294 = sbr.rel (%p292) target = $region48
        $region47: #{tpu_custom_call.1} parent=39 // pred_region
          %v295 = vld [vmem:[%s247] sm:$0xff]
          %v296 = vld [vmem:[%s247 + $0x8] sm:$0xff]
          %297 = vst [vmem:[#allocation2] sm:$0xff] %v295
          %300 = vrot.lane.b32.xlu0 %v295, 127
          %v301 = vpop.permute.xlu0 %300
          %302 = vrot.lane.b32.xlu0 %v296, 127
          %v303 = vpop.permute.xlu0 %302
          %vm304 = vcmask 1039360
          %v305 = vsel %vm304, %v301, %v303
          %307 = vst [vmem:[#allocation2 + $0x8] sm:$0xff] %v305
          %308 = vrot.lane.b32.xlu0 %v295, 126
          %v309 = vpop.permute.xlu0 %308
          %310 = vrot.lane.b32.xlu0 %v296, 126
          %v311 = vpop.permute.xlu0 %310
          %vm312 = vcmask 1031168
          %v313 = vsel %vm312, %v309, %v311
          %315 = vst [vmem:[#allocation2 + $0x10] sm:$0xff] %v313
        $region48: #{tpu_custom_call.1} parent=39 // pred_fallthru
          _
        %v316 = vld [vmem:[%s286] sm:$0xff]
        %v317 = vld [vmem:[#allocation2] sm:$0xff]
        %v318 = vld [vmem:[#allocation2 + $0x8] sm:$0xff]
        %v319 = vld [vmem:[#allocation2 + $0x10] sm:$0xff]
        %v320 = vld [vmem:[%s290] sm:$0xff]
        %322 = vset.pattern.permute.xlu0 0
        %323 = vperm.xlu0 %322, %v320
        %v324 = vpop.permute.xlu0 %323
        %vm326 = vcmask 195584
        %v328 = vsel %vm326, %v316, 0
        %330 = vmatpush.msra.mxu0 0.0
        %331 = vmatpush.msra.mxu0 0.0
        %332 = vmatpush.msra.mxu0 0.0
        %333 = vmatpush.msra.mxu0 0.0
        %334 = vmatpush.msra.mxu0 0.0
        %335 = vmatpush.msra.mxu0 0.0
        %336 = vmatpush.msra.mxu0 0.0
        %337 = vmatpush.msra.mxu0 0.0
        %338 = vmatpush.msra.mxu0 0.0
        %339 = vmatpush.msra.mxu0 0.0
        %340 = vmatpush.msra.mxu0 0.0
        %341 = vmatpush.msra.mxu0 0.0
        %342 = vmatpush.msra.mxu0 0.0
        %343 = vmatpush.msra.mxu0 %v319
        %344 = vmatpush.msra.mxu0 %v318
        %345 = vmatpush.msra.mxu0 %v317
        %346 = vmatmul.f32.gmra.mxu0 %v328
        %v347 = vpop.f32.mrf.mxu0
        %v348 = vadd.f32 %v324, %v347
        %349 = vdwg.mxu0
        %v350 = vlaneseq
        %v351 = vand.u32 %v350, 127
        %vm352 = vcmp.lt.s32.totalorder %v351, 16
        %v353 = vsel %vm352, 1, 0
        %vm354 = vcmp.eq.s32.totalorder %v353, 1
        %v355 = vsel %vm354, %v348, 0.0
        %356 = vadd.xlane.f32.xlu0 %v355
        %v357 = vpop.xlane.xlu0 %356
        %v358 = vmul.f32 %v355, %v355
        %359 = vadd.xlane.f32.xlu0 %v358
        %v360 = vpop.xlane.xlu0 %359
        %vm361 = vcmask 7168
        %v362 = vsel %vm361, %v357, %v360
        %v363 = vld [vmem:[%s4] sm:$0xf]
        %vm364 = vcmask 64512
        %v366 = vsel %vm364, %v363, 0
        %368 = vmatpush.msra.mxu0 0.0
        %369 = vmatpush.msra.mxu0 0.0
        %370 = vmatpush.msra.mxu0 0.0
        %371 = vmatpush.msra.mxu0 0.0
        %372 = vmatpush.msra.mxu0 0.0
        %373 = vmatpush.msra.mxu0 0.0
        %374 = vmatpush.msra.mxu0 0.0
        %375 = vmatpush.msra.mxu0 0.0
        %376 = vmatpush.msra.mxu0 0.0
        %377 = vmatpush.msra.mxu0 0.0
        %378 = vmatpush.msra.mxu0 0.0
        %379 = vmatpush.msra.mxu0 0.0
        %380 = vmatpush.msra.mxu0 0.0
        %381 = vmatpush.msra.mxu0 0.0
        %382 = vmatpush.msra.mxu0 0.0
        %383 = vmatpush.msra.mxu0 %v362
        %384 = vmatmul.f32.gmra.mxu0 %v366
        %v385 = vpop.f32.mrf.mxu0
        %v386 = vadd.f32 0.0, %v385
        %387 = vdwg.mxu0
        %v388 = vrcp.pop 32.0
        %v389 = vmul.f32 32.0, %v388
        %v390 = vsub.f32 1.0, %v389
        %v391 = vmul.f32 %v388, %v390
        %v392 = vadd.f32 %v388, %v391
        %vm393 = vweird.f32 %v388
        %v394 = vsel %vm393, %v388, %v392
        %v395 = vmul.f32 %v386, %v394
        %v396 = vmul.f32 %v395, %v395
        %398 = vrot.lane.b32.xlu0 %v396, 1
        %v399 = vpop.permute.xlu0 %398
        %v401 = vsub.f32 %v395, %v399
        %v402 = vmax.f32 %v401, 0.0
        %v403 = vadd.f32 %v402, 1e-05
        %v404 = vrsqrt.pop %v403
        %v405 = vmul.f32 %v404, %v403
        %v406 = vmul.f32 %v405, %v404
        %v407 = vmul.f32 0.5, %v406
        %v408 = vsub.f32 1.5, %v407
        %v409 = vmul.f32 %v404, %v408
        %vm410 = vweird.f32 %v403
        %vm411 = vweird.f32 %v404
        %vm412 = vmor %vm410, %vm411
        %v413 = vsel %vm412, %v404, %v409
        %v414 = vsel %vm361, %v395, %v413
        %v415 = vld [vmem:[%s3] sm:$0xff]
        %vm416 = vcmask 31744
        %v418 = vsel %vm416, %v415, 0
        %vm420 = vcmask 1043456
        %v422 = vsel %vm420, %v414, 0
        %424 = vmatpush.msra.mxu0 0.0
        %425 = vmatpush.msra.mxu0 0.0
        %426 = vmatpush.msra.mxu0 0.0
        %427 = vmatpush.msra.mxu0 0.0
        %428 = vmatpush.msra.mxu0 0.0
        %429 = vmatpush.msra.mxu0 0.0
        %430 = vmatpush.msra.mxu0 0.0
        %431 = vmatpush.msra.mxu0 0.0
        %432 = vmatpush.msra.mxu0 0.0
        %433 = vmatpush.msra.mxu0 0.0
        %434 = vmatpush.msra.mxu0 0.0
        %435 = vmatpush.msra.mxu0 0.0
        %436 = vmatpush.msra.mxu0 0.0
        %437 = vmatpush.msra.mxu0 0.0
        %438 = vmatpush.msra.mxu0 0.0
        %439 = vmatpush.msra.mxu0 %v422
        %440 = vmatmul.f32.gmra.mxu0 %v418
        %v441 = vpop.f32.mrf.mxu0
        %v442 = vadd.f32 0.0, %v441
        %443 = vdwg.mxu0
        %445 = vset.pattern.permute.xlu0 0
        %446 = vperm.xlu0 %445, %v442
        %v447 = vpop.permute.xlu0 %446
        %v449 = vsub.f32 %v348, %v447
        %450 = vset.pattern.permute.xlu0 1
        %451 = vperm.xlu0 %450, %v442
        %v452 = vpop.permute.xlu0 %451
        %v454 = vmul.f32 %v449, %v452
        %v455 = vmin.f32 %v454, 20.0
        %v456 = vmul.f32 %v455, 1.442695
        %v457 = vpow.pop %v456
        %v458 = vadd.f32 %v457, 2.0
        %v459 = vmul.f32 %v457, %v458
        %v460 = vadd.f32 %v459, 2.0
        %v461 = vrcp.pop %v460
        %v462 = vmul.f32 %v460, %v461
        %v463 = vsub.f32 1.0, %v462
        %v464 = vmul.f32 %v461, %v463
        %v465 = vadd.f32 %v461, %v464
        %vm466 = vweird.f32 %v460
        %vm467 = vweird.f32 %v461
        %vm468 = vmor %vm466, %vm467
        %v469 = vsel %vm468, %v461, %v465
        %v470 = vand.u32 2147483647, %v460
        %vm471 = vcmp.eq.f32.partialorder %v470, 8.507059e+37
        %v472 = vand.u32 %v460, 2147483648
        %v473 = vor.u32 1.1754944e-38, %v472
        %v474 = vsel %vm471, %v473, %v469
        %v475 = vmul.f32 %v459, %v474
        %vm476 = vcmp.gt.f32.partialorder %v454, 20.0
        %v477 = vsel %vm476, 1.0, %v475
        %v478 = vmul.f32 %v454, %v477
        %479 = vst [vmem:[%s282] sm:$0xff] %v478
        %s480 = sand.u32 %s164, 1
        %s481 = scalar_lea.sflag [#allocation5], %s480
        %s482 = sand.u32 %s164, 1
        %s483 = smul.addr %s482, 8
        %s484 = scalar_lea.vmem [#allocation6], %s483
        // Predicated region
        $region49: #{tpu_custom_call.1} parent=39 // pred_check
          %p485 = pneg %p174
        $region50: #{tpu_custom_call.1} parent=39 // pred_check_branch
          %487 = sbr.rel (%p485) target = $region52
        $region51: #{tpu_custom_call.1} parent=39 // pred_region
          %489 = vsyncadd %s481, 0
          %s490 = smul.addr %s26, 2
          %s491 = sadd.s32 %s27, %s490
          %s492 = smul.addr %s491, 8
          %s493 = scalar_lea.hbm %s5, %s492
          %s495 = sshll.u32 %s484, 4
          %s496 = int_to_ptr.vmem [resolvable:$true] %s495
          %s497 = sshll.u32 %s493, 4
          %s498 = int_to_ptr.hbm [resolvable:$true] %s497
          %500 = dma.vmem_to_hbm [thread:$0]  %s496, 128, %s498, %s481
        $region52: #{tpu_custom_call.1} parent=39 // pred_fallthru
          _
      $region40: #{tpu_custom_call.1} parent=5 // pred_fallthru
        _
      %p501 = scmp.le.s32.totalorder 2, %s17
      // Predicated region
      $region53: #{tpu_custom_call.1} parent=5 // pred_check
        %p502 = pneg %p501
      $region54: #{tpu_custom_call.1} parent=5 // pred_check_branch
        %504 = sbr.rel (%p502) target = $region56
      $region55: #{tpu_custom_call.1} parent=5 // pred_region
        %s505 = ssub.s32 %s17, 2
        // Predicated region
        $region57: #{tpu_custom_call.1} parent=55 // pred_check
          %p506 = pneg %p180
        $region58: #{tpu_custom_call.1} parent=55 // pred_check_branch
          %508 = sbr.rel (%p506) target = $region60
        $region59: #{tpu_custom_call.1} parent=55 // pred_region
          %s509 = sand.u32 %s165, 1
          %s510 = scalar_lea.sflag [#allocation5], %s509
          %s511 = sand.u32 %s165, 1
          %s512 = smul.addr %s511, 8
          %s513 = scalar_lea.vmem [#allocation6], %s512
          %515 = dma.done %s510, 128
        $region60: #{tpu_custom_call.1} parent=55 // pred_fallthru
          _
      $region56: #{tpu_custom_call.1} parent=5 // pred_fallthru
        _
    $region6: #{tpu_custom_call.1} parent=1 // loop_footer
      %s21 = sadd.s32 1, %s17
    $region7: #{tpu_custom_call.1} parent=1 // loop_footer_branch
      %16 = sbr.rel target = $region3
    $region8: #{tpu_custom_call.1} parent=1 // loop_exit
      _
    %516 = vsyncpa [#allocation4], 1
    %s517 = scalar_lea.sflag [#allocation4], 1
    %518 = vsyncpa %s517, 1
    %519 = vsyncpa [#allocation5], 1
    %s520 = scalar_lea.sflag [#allocation5], 1
    %521 = vsyncpa %s520, 1

</llo_original>
